<compile_context>
chip_gen: v6e
topology: v6e:2x2x1
jax: 0.10.0
libtpu: 0.0.40
codegen_flags: <defaults>
</compile_context>

<pallas_src>
import jax
import jax.numpy as jnp
from jax.experimental import pallas as pl
from jax.experimental.pallas import tpu as pltpu

# ---- model / problem sizes (match HRGCN defaults at small scale) ----
B = 2              # graphs in the batch
N = 32             # nodes per graph
BN = B * N         # folded node count
F_RAW, F = 7, 8    # feature_size = 7, padded to 8 (last column is a constant 1 -> bias carrier)
T_RAW, T = 7, 8    # num_node_types = 7, one-hot padded to 8
HC = 16            # hidden_channels
D = 32             # out_embed_s
S = 3              # len(source_types) -> source_types = [0, 1, 2]
SHC = S * HC       # 48
LANE = 128
NEG_SLOPE = 0.01   # nn.LeakyReLU() default negative_slope

# row offsets inside the bf16 weight slab (all 16-aligned => free bf16 ref slices)
W1_R, W2_R, WSRC_R, WHID_R, WOUT_R, W_ROWS = 0, 16, 144, 192, 208, 224
W_LANES = 2 * LANE                              # 256-lane slab
# row offsets inside the f32 bias/readout slab
F_READ_R, F_BSELF_R, F_BHID_R, F_BOUT_R, F_WFC_R, F_BFC_R = 0, 8, 9, 10, 11, 12


def hrgcn_kernel(xin_ref, adj_ref, w_ref, f_ref, out_ref):
    f32 = jnp.float32
    bf = jnp.bfloat16

    xin = xin_ref[...]                               # (BN, 16) bf16  [features+1 | type one-hot]
    adj = adj_ref[...]                               # (BN, BN) bf16  block-diagonal, unnormalized

    # exact f32 degree reciprocal, applied AFTER the aggregation matmuls (zero-degree -> zero row)
    deg = jnp.sum(adj.astype(f32), axis=-1, keepdims=True)            # (BN, 1)
    rdeg = jnp.where(deg > 0.0, 1.0 / jnp.maximum(deg, 1.0), 0.0)

    # --- stage 1: fused per-node-type projection (+bias) and type-mask, ONE matmul ------------
    w1 = w_ref[W1_R:W1_R + 16, :]                                      # (16, 256)
    c1 = jnp.dot(xin, w1, preferred_element_type=f32)                  # (BN, 256)
    h_all = c1[:, 0:LANE]                           # lanes [t*HC,(t+1)*HC) = x @ W_t + b_t
    t_mask = c1[:, LANE:2 * LANE]                   # lane-expanded node-type one-hot
    # TODO(synk): source mask assumes source_types == [0,1,2] (first S node types); a general set
    # would need a selector block inside W1 like the previous version's sel48.
    nbr = c1[:, LANE:LANE + SHC]                    # (BN, 48) source-type mask
    masked = (h_all * t_mask).astype(bf)            # (BN, 128) active type block only

    # --- stage 2: merged self-transform + message tiling, ONE (128,64) matmul -----------------
    w2 = w_ref[W2_R:W2_R + LANE, 0:HC + SHC]                           # (128, 64) = [fold@wself | tiled fold]
    st2 = jnp.dot(masked, w2, preferred_element_type=f32)              # (BN, 64)
    h_self = st2[:, 0:HC]                           # h @ w_self
    h_tiled = st2[:, HC:HC + SHC]                   # h tiled across the S source blocks

    m_all = (nbr * h_tiled).astype(bf)                                 # (BN, 48)
    agg = jnp.dot(adj, m_all, preferred_element_type=f32) * rdeg       # per-source-type mean aggregation
    wsrc = w_ref[WSRC_R:WSRC_R + SHC, 0:HC]                            # (48, 16) stacked W_src
    msg = jnp.dot(agg.astype(bf), wsrc, preferred_element_type=f32)    # (BN, 16)

    bself = f_ref[F_BSELF_R:F_BSELF_R + 1, 0:HC]
    h1 = jnp.maximum(h_self + bself + msg, 0.0)                        # (BN, HC)

    # --- stage 3: hidden conv layer (num_hidden_conv_layers = 1) ------------------------------
    h2a = jnp.dot(adj, h1.astype(bf), preferred_element_type=f32) * rdeg
    whid = w_ref[WHID_R:WHID_R + HC, 0:HC]
    bhid = f_ref[F_BHID_R:F_BHID_R + 1, 0:HC]
    h2 = jnp.maximum(jnp.dot(h2a.astype(bf), whid, preferred_element_type=f32) + bhid, 0.0)

    # --- stage 4: per-graph mean readout (commuted before wout) + output projection -----------
    readout = f_ref[F_READ_R:F_READ_R + 8, 0:BN]                       # (8, BN), rows >= B are zero
    g2 = jnp.dot(readout.astype(bf), h2.astype(bf), preferred_element_type=f32)   # (8, HC)
    wout = w_ref[WOUT_R:WOUT_R + HC, 0:D]
    bout = f_ref[F_BOUT_R:F_BOUT_R + 1, 0:D]
    g = jnp.dot(g2.astype(bf), wout, preferred_element_type=f32) + bout            # (8, D)

    # --- HRGCN head: embed_act = LeakyReLU, final_fc = Linear(D, 1) + Sigmoid ------------------
    g = jnp.where(g > 0.0, g, NEG_SLOPE * g)
    wfc = f_ref[F_WFC_R:F_WFC_R + 1, 0:D]
    bfc = f_ref[F_BFC_R:F_BFC_R + 1, 0:1]
    logit = jnp.sum(g * wfc, axis=-1, keepdims=True) + bfc                          # (8, 1)
    score = 1.0 / (1.0 + jnp.exp(-logit))

    # single lane-dense (8,128) output slab: lanes [0,D)=embedding, [D,2D)=score bcast, rest 0
    out_ref[...] = jnp.concatenate(
        [g, jnp.broadcast_to(score, (8, D)), jnp.zeros((8, LANE - 2 * D), f32)], axis=-1)


def pack_weights(params):
    """One-time packing of all parameters into two tile-aligned slabs (hoisted out of forward)."""
    f32 = jnp.float32

    # stage-1 packed per-type projection: block t in lanes [t*HC,(t+1)*HC); row F_RAW carries b_t
    blocks = jnp.concatenate([params["w_node"], params["b_node"][:, None, :]], axis=1)  # (T_RAW, F, HC)
    wpack = jnp.transpose(blocks, (1, 0, 2)).reshape(F, T_RAW * HC)
    wpack = jnp.pad(wpack, ((0, 0), (0, LANE - T_RAW * HC)))                            # (8, 128)
    expand = jnp.repeat(jnp.eye(T, dtype=f32), HC, axis=1)                              # (8, 128)
    w1 = jnp.zeros((16, W_LANES), f32)
    w1 = w1.at[0:F, 0:LANE].set(wpack)               # feature rows -> per-type projections
    w1 = w1.at[F:F + T, LANE:2 * LANE].set(expand)   # one-hot rows -> lane-expanded type mask

    # stage-2 merged matrix: [fold @ w_self | fold tiled over S source blocks]  (fold matmul removed)
    fold = jnp.tile(jnp.eye(HC, dtype=f32), (T, 1))                                     # (128, 16)
    w2 = jnp.concatenate([fold @ params["w_self"], jnp.tile(fold, (1, S))], axis=1)     # (128, 64)

    wsrc = params["w_src"].reshape(SHC, HC)                                             # (48, 16)

    wslab = jnp.zeros((W_ROWS, W_LANES), f32)
    wslab = wslab.at[W1_R:W1_R + 16, :].set(w1)
    wslab = wslab.at[W2_R:W2_R + LANE, 0:HC + SHC].set(w2)
    wslab = wslab.at[WSRC_R:WSRC_R + SHC, 0:HC].set(wsrc)
    wslab = wslab.at[WHID_R:WHID_R + HC, 0:HC].set(params["w_hid"])
    wslab = wslab.at[WOUT_R:WOUT_R + HC, 0:D].set(params["w_out"])
    wslab = wslab.astype(jnp.bfloat16)

    # f32 slab: per-graph mean readout (8 padded rows) + all biases + final fc
    readout = jnp.repeat(jnp.eye(B, dtype=f32), N, axis=1) / N                          # (B, BN)
    fslab = jnp.zeros((16, LANE), f32)
    fslab = fslab.at[F_READ_R:F_READ_R + B, 0:BN].set(readout)
    fslab = fslab.at[F_BSELF_R, 0:HC].set(params["b_self"][0])
    fslab = fslab.at[F_BHID_R, 0:HC].set(params["b_hid"][0])
    fslab = fslab.at[F_BOUT_R, 0:D].set(params["b_out"][0])
    fslab = fslab.at[F_WFC_R, 0:D].set(params["w_fc"][0])
    fslab = fslab.at[F_BFC_R, 0].set(params["b_fc"][0, 0])
    return wslab, fslab


@jax.jit
def hrgcn_forward(x, ntype, adj, wslab, fslab):
    """Returns (_out, (labels, methods), _out_h) like HRGCN.forward(train=False)."""
    bf = jnp.bfloat16

    # per-call data: lane-concat [features | 1 | type one-hot] and block-diagonal adjacency
    x2 = x.reshape(BN, F_RAW)
    xin = jnp.concatenate(
        [x2, jnp.ones((BN, 1), jnp.float32), ntype.reshape(BN, T)], axis=-1).astype(bf)   # (BN, 16)
    adj_bd = (jnp.eye(B, dtype=jnp.float32)[:, None, :, None] * adj[:, :, None, :]
              ).reshape(BN, BN).astype(bf)                                                 # (BN, BN)

    def full(shape):
        return pl.BlockSpec(shape, lambda i: (0, 0))

    slab = pl.pallas_call(
        hrgcn_kernel,
        out_shape=jax.ShapeDtypeStruct((8, LANE), jnp.float32),
        grid_spec=pltpu.PrefetchScalarGridSpec(
            num_scalar_prefetch=0,
            grid=(1,),
            in_specs=[full(xin.shape), full(adj_bd.shape), full(wslab.shape), full(fslab.shape)],
            out_specs=pl.BlockSpec((8, LANE), lambda i: (0, 0)),
        ),
        # NOTE: for large batches switch to grid=(B,) + ("parallel",) so both v7x TCs are used.
        compiler_params=pltpu.CompilerParams(dimension_semantics=("arbitrary",)),
        cost_estimate=pl.CostEstimate(
            flops=2_200_000, transcendentals=64, bytes_accessed=140_000),
    )(xin, adj_bd, wslab, fslab)

    _out_h = slab[:B, :D]            # graph embeddings (after LeakyReLU), (B, D)
    _out = slab[:B, D:D + 1]         # sigmoid scores, (B, 1)
    # train=False path: all labels 0, all augmentation methods 0
    combined_labels = jnp.zeros((B, 1), jnp.int32)
    combined_methods = jnp.zeros((B, 1), jnp.int32)
    return _out, (combined_labels, combined_methods), _out_h


def make_params(key):
    ks = jax.random.split(key, 11)

    def init(k, shape, scale=0.1):
        return scale * jax.random.normal(k, shape, jnp.float32)

    return dict(
        w_node=init(ks[0], (T_RAW, F_RAW, HC)),   # per-node-type input projections
        b_node=init(ks[1], (T_RAW, HC)),
        w_src=init(ks[2], (S, HC, HC)),           # per-source-type message transform
        w_self=init(ks[3], (HC, HC)),
        b_self=init(ks[4], (1, HC)),
        w_hid=init(ks[5], (HC, HC)),              # num_hidden_conv_layers = 1
        b_hid=init(ks[6], (1, HC)),
        w_out=init(ks[7], (HC, D)),               # projection to out_embed_s
        b_out=init(ks[8], (1, D)),
        w_fc=init(ks[9], (1, D)),                 # final_fc Linear(D, 1) weight (row layout)
        b_fc=init(ks[10], (1, 1)),
    )


if __name__ == "__main__":
    key = jax.random.PRNGKey(0)
    k_x, k_t, k_a, k_p = jax.random.split(key, 4)

    # node features (feature_size = 7)
    x = jax.random.normal(k_x, (B, N, F_RAW), jnp.float32)

    # node types in [0, 7), one-hot padded to width 8
    ntype_ids = jax.random.randint(k_t, (B, N), 0, T_RAW)
    ntype = jax.nn.one_hot(ntype_ids, T, dtype=jnp.float32)

    # random symmetric adjacency with self-loops
    adj = (jax.random.uniform(k_a, (B, N, N)) < 0.2).astype(jnp.float32)
    adj = jnp.maximum(adj, jnp.transpose(adj, (0, 2, 1)))
    adj = jnp.maximum(adj, jnp.eye(N, dtype=jnp.float32)[None])

    params = make_params(k_p)
    wslab, fslab = pack_weights(params)   # one-time parameter packing (hoisted out of forward)

    _out, (labels, methods), _out_h = hrgcn_forward(x, ntype, adj, wslab, fslab)
    jax.block_until_ready((_out, labels, methods, _out_h))

    assert _out.shape == (B, 1) and _out_h.shape == (B, D)
    assert labels.shape == (B, 1) and methods.shape == (B, 1)
    assert bool(jnp.all((_out >= 0.0) & (_out <= 1.0)))
    print("KERNEL_OK")
</pallas_src>

<mosaic_0001>
module attributes {stable_mosaic.version = 11 : i64} {
  func.func @hrgcn_kernel(%arg0: i32, %arg1: memref<64x16xbf16, #tpu.memory_space<vmem>>, %arg2: memref<64x64xbf16, #tpu.memory_space<vmem>>, %arg3: memref<224x256xbf16, #tpu.memory_space<vmem>>, %arg4: memref<16x128xf32, #tpu.memory_space<vmem>>, %arg5: memref<8x128xf32, #tpu.memory_space<vmem>>) attributes {dimension_semantics = [#tpu.dimension_semantics<arbitrary>], iteration_bounds = array<i64: 1>, scalar_prefetch = 0 : i64, scratch_operands = 0 : i64, tpu.core_type = #tpu.core_type<tc>, window_params = [{pipeline_mode = #tpu.pipeline_mode<synchronous>, transform_indices = @transform_0, window_bounds = array<i64: 64, 16>}, {pipeline_mode = #tpu.pipeline_mode<synchronous>, transform_indices = @transform_1, window_bounds = array<i64: 64, 64>}, {pipeline_mode = #tpu.pipeline_mode<synchronous>, transform_indices = @transform_2, window_bounds = array<i64: 224, 256>}, {pipeline_mode = #tpu.pipeline_mode<synchronous>, transform_indices = @transform_3, window_bounds = array<i64: 16, 128>}, {pipeline_mode = #tpu.pipeline_mode<synchronous>, transform_indices = @transform_4, window_bounds = array<i64: 8, 128>}]} {
    %c0 = arith.constant 0 : index
    %c0_0 = arith.constant 0 : index
    %0 = vector.load %arg1[%c0, %c0_0] : memref<64x16xbf16, #tpu.memory_space<vmem>>, vector<64x16xbf16>
    %c0_1 = arith.constant 0 : index
    %c0_2 = arith.constant 0 : index
    %1 = vector.load %arg2[%c0_1, %c0_2] : memref<64x64xbf16, #tpu.memory_space<vmem>>, vector<64x64xbf16>
    %2 = arith.extf %1 : vector<64x64xbf16> to vector<64x64xf32>
    %cst = arith.constant dense<0.000000e+00> : vector<64xf32>
    %3 = vector.multi_reduction <add>, %2, %cst [1] : vector<64x64xf32> to vector<64xf32>
    %4 = vector.shape_cast %3 : vector<64xf32> to vector<64x1xf32>
    %cst_3 = arith.constant 0.000000e+00 : f32
    %5 = vector.broadcast %cst_3 : f32 to vector<64x1xf32>
    %6 = arith.cmpf ogt, %4, %5 : vector<64x1xf32>
    %cst_4 = arith.constant 1.000000e+00 : f32
    %7 = vector.broadcast %cst_4 : f32 to vector<64x1xf32>
    %8 = arith.maximumf %4, %7 : vector<64x1xf32>
    %cst_5 = arith.constant 1.000000e+00 : f32
    %9 = vector.broadcast %cst_5 : f32 to vector<64x1xf32>
    %10 = arith.divf %9, %8 : vector<64x1xf32>
    %cst_6 = arith.constant 0.000000e+00 : f32
    %11 = vector.broadcast %cst_6 : f32 to vector<64x1xf32>
    %12 = arith.select %6, %10, %11 : vector<64x1xi1>, vector<64x1xf32>
    %c0_7 = arith.constant 0 : index
    %c0_8 = arith.constant 0 : index
    %13 = vector.load %arg3[%c0_7, %c0_8] : memref<224x256xbf16, #tpu.memory_space<vmem>>, vector<16x256xbf16>
    %cst_9 = arith.constant dense<0.000000e+00> : vector<64x256xf32>
    %14 = tpu.matmul %0, %13, %cst_9 {dimension_numbers = #tpu.dot_dimension_numbers<[1], [0], [0], [1], [0, 0, 1, 1], [], []>} : vector<64x16xbf16>, vector<16x256xbf16>, vector<64x256xf32> -> vector<64x256xf32>
    %15 = vector.extract_strided_slice %14 {offsets = [0, 0], sizes = [64, 128], strides = [1, 1]} : vector<64x256xf32> to vector<64x128xf32>
    %16 = vector.extract_strided_slice %14 {offsets = [0, 128], sizes = [64, 128], strides = [1, 1]} : vector<64x256xf32> to vector<64x128xf32>
    %17 = vector.extract_strided_slice %14 {offsets = [0, 128], sizes = [64, 48], strides = [1, 1]} : vector<64x256xf32> to vector<64x48xf32>
    %18 = arith.mulf %15, %16 : vector<64x128xf32>
    %19 = arith.truncf %18 : vector<64x128xf32> to vector<64x128xbf16>
    %c16 = arith.constant 16 : index
    %c0_10 = arith.constant 0 : index
    %20 = vector.load %arg3[%c16, %c0_10] : memref<224x256xbf16, #tpu.memory_space<vmem>>, vector<128x64xbf16>
    %cst_11 = arith.constant dense<0.000000e+00> : vector<64x64xf32>
    %21 = tpu.matmul %19, %20, %cst_11 {dimension_numbers = #tpu.dot_dimension_numbers<[1], [0], [0], [1], [0, 0, 1, 1], [], []>} : vector<64x128xbf16>, vector<128x64xbf16>, vector<64x64xf32> -> vector<64x64xf32>
    %22 = vector.extract_strided_slice %21 {offsets = [0, 0], sizes = [64, 16], strides = [1, 1]} : vector<64x64xf32> to vector<64x16xf32>
    %23 = vector.extract_strided_slice %21 {offsets = [0, 16], sizes = [64, 48], strides = [1, 1]} : vector<64x64xf32> to vector<64x48xf32>
    %24 = arith.mulf %17, %23 : vector<64x48xf32>
    %25 = arith.truncf %24 : vector<64x48xf32> to vector<64x48xbf16>
    %cst_12 = arith.constant dense<0.000000e+00> : vector<64x48xf32>
    %26 = tpu.matmul %1, %25, %cst_12 {dimension_numbers = #tpu.dot_dimension_numbers<[1], [0], [0], [1], [0, 0, 1, 1], [], []>} : vector<64x64xbf16>, vector<64x48xbf16>, vector<64x48xf32> -> vector<64x48xf32>
    %27 = vector.broadcast %12 : vector<64x1xf32> to vector<64x48xf32>
    %28 = arith.mulf %26, %27 : vector<64x48xf32>
    %c144 = arith.constant 144 : index
    %c0_13 = arith.constant 0 : index
    %29 = vector.load %arg3[%c144, %c0_13] : memref<224x256xbf16, #tpu.memory_space<vmem>>, vector<48x16xbf16>
    %30 = arith.truncf %28 : vector<64x48xf32> to vector<64x48xbf16>
    %cst_14 = arith.constant dense<0.000000e+00> : vector<64x16xf32>
    %31 = tpu.matmul %30, %29, %cst_14 {dimension_numbers = #tpu.dot_dimension_numbers<[1], [0], [0], [1], [0, 0, 1, 1], [], []>} : vector<64x48xbf16>, vector<48x16xbf16>, vector<64x16xf32> -> vector<64x16xf32>
    %c8 = arith.constant 8 : index
    %c0_15 = arith.constant 0 : index
    %32 = vector.load %arg4[%c8, %c0_15] : memref<16x128xf32, #tpu.memory_space<vmem>>, vector<1x16xf32>
    %33 = vector.broadcast %32 : vector<1x16xf32> to vector<64x16xf32>
    %34 = arith.addf %22, %33 : vector<64x16xf32>
    %35 = arith.addf %34, %31 : vector<64x16xf32>
    %cst_16 = arith.constant 0.000000e+00 : f32
    %36 = vector.broadcast %cst_16 : f32 to vector<64x16xf32>
    %37 = arith.maximumf %35, %36 : vector<64x16xf32>
    %38 = arith.truncf %37 : vector<64x16xf32> to vector<64x16xbf16>
    %cst_17 = arith.constant dense<0.000000e+00> : vector<64x16xf32>
    %39 = tpu.matmul %1, %38, %cst_17 {dimension_numbers = #tpu.dot_dimension_numbers<[1], [0], [0], [1], [0, 0, 1, 1], [], []>} : vector<64x64xbf16>, vector<64x16xbf16>, vector<64x16xf32> -> vector<64x16xf32>
    %40 = vector.broadcast %12 : vector<64x1xf32> to vector<64x16xf32>
    %41 = arith.mulf %39, %40 : vector<64x16xf32>
    %c192 = arith.constant 192 : index
    %c0_18 = arith.constant 0 : index
    %42 = vector.load %arg3[%c192, %c0_18] : memref<224x256xbf16, #tpu.memory_space<vmem>>, vector<16x16xbf16>
    %c9 = arith.constant 9 : index
    %c0_19 = arith.constant 0 : index
    %43 = vector.load %arg4[%c9, %c0_19] : memref<16x128xf32, #tpu.memory_space<vmem>>, vector<1x16xf32>
    %44 = arith.truncf %41 : vector<64x16xf32> to vector<64x16xbf16>
    %cst_20 = arith.constant dense<0.000000e+00> : vector<64x16xf32>
    %45 = tpu.matmul %44, %42, %cst_20 {dimension_numbers = #tpu.dot_dimension_numbers<[1], [0], [0], [1], [0, 0, 1, 1], [], []>} : vector<64x16xbf16>, vector<16x16xbf16>, vector<64x16xf32> -> vector<64x16xf32>
    %46 = vector.broadcast %43 : vector<1x16xf32> to vector<64x16xf32>
    %47 = arith.addf %45, %46 : vector<64x16xf32>
    %cst_21 = arith.constant 0.000000e+00 : f32
    %48 = vector.broadcast %cst_21 : f32 to vector<64x16xf32>
    %49 = arith.maximumf %47, %48 : vector<64x16xf32>
    %c0_22 = arith.constant 0 : index
    %c0_23 = arith.constant 0 : index
    %50 = vector.load %arg4[%c0_22, %c0_23] : memref<16x128xf32, #tpu.memory_space<vmem>>, vector<8x64xf32>
    %51 = arith.truncf %50 : vector<8x64xf32> to vector<8x64xbf16>
    %52 = arith.truncf %49 : vector<64x16xf32> to vector<64x16xbf16>
    %cst_24 = arith.constant dense<0.000000e+00> : vector<8x16xf32>
    %53 = tpu.matmul %51, %52, %cst_24 {dimension_numbers = #tpu.dot_dimension_numbers<[1], [0], [0], [1], [0, 0, 1, 1], [], []>} : vector<8x64xbf16>, vector<64x16xbf16>, vector<8x16xf32> -> vector<8x16xf32>
    %c208 = arith.constant 208 : index
    %c0_25 = arith.constant 0 : index
    %54 = vector.load %arg3[%c208, %c0_25] : memref<224x256xbf16, #tpu.memory_space<vmem>>, vector<16x32xbf16>
    %c10 = arith.constant 10 : index
    %c0_26 = arith.constant 0 : index
    %55 = vector.load %arg4[%c10, %c0_26] : memref<16x128xf32, #tpu.memory_space<vmem>>, vector<1x32xf32>
    %56 = arith.truncf %53 : vector<8x16xf32> to vector<8x16xbf16>
    %cst_27 = arith.constant dense<0.000000e+00> : vector<8x32xf32>
    %57 = tpu.matmul %56, %54, %cst_27 {dimension_numbers = #tpu.dot_dimension_numbers<[1], [0], [0], [1], [0, 0, 1, 1], [], []>} : vector<8x16xbf16>, vector<16x32xbf16>, vector<8x32xf32> -> vector<8x32xf32>
    %58 = vector.broadcast %55 : vector<1x32xf32> to vector<8x32xf32>
    %59 = arith.addf %57, %58 : vector<8x32xf32>
    %cst_28 = arith.constant 0.000000e+00 : f32
    %60 = vector.broadcast %cst_28 : f32 to vector<8x32xf32>
    %61 = arith.cmpf ogt, %59, %60 : vector<8x32xf32>
    %cst_29 = arith.constant 0.00999999977 : f32
    %62 = vector.broadcast %cst_29 : f32 to vector<8x32xf32>
    %63 = arith.mulf %62, %59 : vector<8x32xf32>
    %64 = arith.select %61, %59, %63 : vector<8x32xi1>, vector<8x32xf32>
    %c11 = arith.constant 11 : index
    %c0_30 = arith.constant 0 : index
    %65 = vector.load %arg4[%c11, %c0_30] : memref<16x128xf32, #tpu.memory_space<vmem>>, vector<1x32xf32>
    %c12 = arith.constant 12 : index
    %c0_31 = arith.constant 0 : index
    %66 = vector.load %arg4[%c12, %c0_31] : memref<16x128xf32, #tpu.memory_space<vmem>>, vector<1x1xf32>
    %67 = vector.broadcast %65 : vector<1x32xf32> to vector<8x32xf32>
    %68 = arith.mulf %64, %67 : vector<8x32xf32>
    %cst_32 = arith.constant dense<0.000000e+00> : vector<8xf32>
    %69 = vector.multi_reduction <add>, %68, %cst_32 [1] : vector<8x32xf32> to vector<8xf32>
    %70 = vector.shape_cast %69 : vector<8xf32> to vector<8x1xf32>
    %71 = vector.broadcast %66 : vector<1x1xf32> to vector<8x1xf32>
    %72 = arith.addf %70, %71 : vector<8x1xf32>
    %cst_33 = arith.constant 0.000000e+00 : f32
    %73 = vector.broadcast %cst_33 : f32 to vector<8x1xf32>
    %74 = arith.subf %73, %72 : vector<8x1xf32>
    %75 = math.exp %74 : vector<8x1xf32>
    %cst_34 = arith.constant 1.000000e+00 : f32
    %76 = vector.broadcast %cst_34 : f32 to vector<8x1xf32>
    %77 = arith.addf %76, %75 : vector<8x1xf32>
    %cst_35 = arith.constant 1.000000e+00 : f32
    %78 = vector.broadcast %cst_35 : f32 to vector<8x1xf32>
    %79 = arith.divf %78, %77 : vector<8x1xf32>
    %80 = vector.shape_cast %79 : vector<8x1xf32> to vector<8x1xf32>
    %81 = vector.broadcast %80 : vector<8x1xf32> to vector<8x32xf32>
    %cst_36 = arith.constant 0.000000e+00 : f32
    %82 = vector.broadcast %cst_36 : f32 to vector<8x64xf32>
    %83 = tpu.concatenate %64, %81, %82 in 1 : vector<8x32xf32>, vector<8x32xf32>, vector<8x64xf32> -> vector<8x128xf32>
    %c0_37 = arith.constant 0 : index
    %c0_38 = arith.constant 0 : index
    %84 = vector.load %arg5[%c0_37, %c0_38] : memref<8x128xf32, #tpu.memory_space<vmem>>, vector<8x128xf32>
    tpu.vector_store %arg5[%c0_37, %c0_38], %83 {strides = array<i32>} : memref<8x128xf32, #tpu.memory_space<vmem>>, vector<8x128xf32>,
    return
  }
  func.func @transform_0(%arg0: i32) -> (i32, i32) {
    %c0_i32 = arith.constant 0 : i32
    %c0_i32_0 = arith.constant 0 : i32
    %c0_i32_1 = arith.constant 0 : i32
    return %c0_i32, %c0_i32_0 : i32, i32
  }
  func.func @transform_1(%arg0: i32) -> (i32, i32) {
    %c0_i32 = arith.constant 0 : i32
    %c0_i32_0 = arith.constant 0 : i32
    %c0_i32_1 = arith.constant 0 : i32
    return %c0_i32, %c0_i32_0 : i32, i32
  }
  func.func @transform_2(%arg0: i32) -> (i32, i32) {
    %c0_i32 = arith.constant 0 : i32
    %c0_i32_0 = arith.constant 0 : i32
    %c0_i32_1 = arith.constant 0 : i32
    return %c0_i32, %c0_i32_0 : i32, i32
  }
  func.func @transform_3(%arg0: i32) -> (i32, i32) {
    %c0_i32 = arith.constant 0 : i32
    %c0_i32_0 = arith.constant 0 : i32
    %c0_i32_1 = arith.constant 0 : i32
    return %c0_i32, %c0_i32_0 : i32, i32
  }
  func.func @transform_4(%arg0: i32) -> (i32, i32) {
    %c0_i32 = arith.constant 0 : i32
    %c0_i32_0 = arith.constant 0 : i32
    %c0_i32_1 = arith.constant 0 : i32
    return %c0_i32, %c0_i32_0 : i32, i32
  }
}

</mosaic_0001>

<llo_original>
// kernel: hrgcn_forward.1
$region0: #{hrgcn_forward.1}
  #allocation0 [shape = 'u32[]', space=smem, size = 0x4, offset = 0x4, fixed_abs, tag = 'smem constant byte address 0x4 - core index']
  #allocation1 [shape = 'u32[144,128]{1,0:T(1,128)}', space=vmem, size = 0x12000, scoped, tag = 'internal scratch']
  %s0 = inlined_call_operand.vmem [shape: bf16[64,16], index: 0, kind: input, shape index: {}]
  %s1 = inlined_call_operand.vmem [shape: bf16[64,64], index: 1, kind: input, shape index: {}]
  %s2 = inlined_call_operand.vmem [shape: bf16[224,256], index: 2, kind: input, shape index: {}]
  %s3 = inlined_call_operand.vmem [shape: f32[16,128], index: 3, kind: input, shape index: {}]
  %s4 = inlined_call_operand.vmem [shape: f32[8,128], index: 4, kind: output, shape index: {}]
  %s5 = sld [smem:[#allocation0]]
  $region26: #{hrgcn_forward.1} parent=0
    _
  %s7 = ssub.s32 1, %s5
  %s8 = scalar_select 0, %s7, %s5
  // Predicated region
  $region2: #{hrgcn_forward.1} parent=0 // pred_check
    _
  $region3: #{hrgcn_forward.1} parent=0 // pred_check_branch
    %10 = sbr.rel (0) target = $region5
  $region4: #{hrgcn_forward.1} parent=0 // pred_region
    _
  $region5: #{hrgcn_forward.1} parent=0 // pred_fallthru
    _
  // Predicated region
  $region6: #{hrgcn_forward.1} parent=0 // pred_check
    _
  $region7: #{hrgcn_forward.1} parent=0 // pred_check_branch
    %12 = sbr.rel (0) target = $region9
  $region8: #{hrgcn_forward.1} parent=0 // pred_region
    _
  $region9: #{hrgcn_forward.1} parent=0 // pred_fallthru
    _
  // Predicated region
  $region10: #{hrgcn_forward.1} parent=0 // pred_check
    _
  $region11: #{hrgcn_forward.1} parent=0 // pred_check_branch
    %14 = sbr.rel (0) target = $region13
  $region12: #{hrgcn_forward.1} parent=0 // pred_region
    _
  $region13: #{hrgcn_forward.1} parent=0 // pred_fallthru
    _
  // Predicated region
  $region14: #{hrgcn_forward.1} parent=0 // pred_check
    _
  $region15: #{hrgcn_forward.1} parent=0 // pred_check_branch
    %16 = sbr.rel (0) target = $region17
  $region16: #{hrgcn_forward.1} parent=0 // pred_region
    _
  $region17: #{hrgcn_forward.1} parent=0 // pred_fallthru
    _
  %v18 = vld [vmem:[%s0] sm:$0xf]
  %v19 = vld [vmem:[%s0 + $0x4] sm:$0xf]
  %v20 = vld [vmem:[%s0 + $0x8] sm:$0xf]
  %v21 = vld [vmem:[%s0 + $0xc] sm:$0xf]
  %v22 = vld [vmem:[%s0 + $0x10] sm:$0xf]
  %v23 = vld [vmem:[%s0 + $0x14] sm:$0xf]
  %v24 = vld [vmem:[%s0 + $0x18] sm:$0xf]
  %v25 = vld [vmem:[%s0 + $0x1c] sm:$0xf]
  %v26 = vld [vmem:[%s1] sm:$0xf]
  %v27 = vld [vmem:[%s1 + $0x4] sm:$0xf]
  %v28 = vld [vmem:[%s1 + $0x8] sm:$0xf]
  %v29 = vld [vmem:[%s1 + $0xc] sm:$0xf]
  %v30 = vld [vmem:[%s1 + $0x10] sm:$0xf]
  %v31 = vld [vmem:[%s1 + $0x14] sm:$0xf]
  %v32 = vld [vmem:[%s1 + $0x18] sm:$0xf]
  %v33 = vld [vmem:[%s1 + $0x1c] sm:$0xf]
  %v34 = vunpack.c.l.bf16 %v26
  %v35 = vunpack.c.l.bf16 %v27
  %v36 = vunpack.c.l.bf16 %v28
  %v37 = vunpack.c.l.bf16 %v29
  %v38 = vunpack.c.l.bf16 %v30
  %v39 = vunpack.c.l.bf16 %v31
  %v40 = vunpack.c.l.bf16 %v32
  %v41 = vunpack.c.l.bf16 %v33
  %vm42 = vcmask 523264
  %v43 = vsel %vm42, %v34, 0.0
  %44 = vadd.xlane.f32.xlu0 %v43
  %v45 = vpop.xlane.xlu0 %44
  %v46 = vsel %vm42, %v35, 0.0
  %47 = vadd.xlane.f32.xlu0 %v46
  %v48 = vpop.xlane.xlu0 %47
  %v49 = vsel %vm42, %v36, 0.0
  %50 = vadd.xlane.f32.xlu0 %v49
  %v51 = vpop.xlane.xlu0 %50
  %v52 = vsel %vm42, %v37, 0.0
  %53 = vadd.xlane.f32.xlu0 %v52
  %v54 = vpop.xlane.xlu0 %53
  %v55 = vsel %vm42, %v38, 0.0
  %56 = vadd.xlane.f32.xlu0 %v55
  %v57 = vpop.xlane.xlu0 %56
  %v58 = vsel %vm42, %v39, 0.0
  %59 = vadd.xlane.f32.xlu0 %v58
  %v60 = vpop.xlane.xlu0 %59
  %v61 = vsel %vm42, %v40, 0.0
  %62 = vadd.xlane.f32.xlu0 %v61
  %v63 = vpop.xlane.xlu0 %62
  %v64 = vsel %vm42, %v41, 0.0
  %65 = vadd.xlane.f32.xlu0 %v64
  %v66 = vpop.xlane.xlu0 %65
  %vm67 = vcmp.gt.f32.partialorder %v45, 0.0
  %vm68 = vcmp.gt.f32.partialorder %v48, 0.0
  %vm69 = vcmp.gt.f32.partialorder %v51, 0.0
  %vm70 = vcmp.gt.f32.partialorder %v54, 0.0
  %vm71 = vcmp.gt.f32.partialorder %v57, 0.0
  %vm72 = vcmp.gt.f32.partialorder %v60, 0.0
  %vm73 = vcmp.gt.f32.partialorder %v63, 0.0
  %vm74 = vcmp.gt.f32.partialorder %v66, 0.0
  %v75 = vmax.f32 %v45, 1.0
  %v76 = vmax.f32 %v48, 1.0
  %v77 = vmax.f32 %v51, 1.0
  %v78 = vmax.f32 %v54, 1.0
  %v79 = vmax.f32 %v57, 1.0
  %v80 = vmax.f32 %v60, 1.0
  %v81 = vmax.f32 %v63, 1.0
  %v82 = vmax.f32 %v66, 1.0
  %v83 = vrcp.pop %v75
  %v84 = vmul.f32 1.0, %v83
  %v85 = vrcp.pop %v76
  %v86 = vmul.f32 1.0, %v85
  %v87 = vrcp.pop %v77
  %v88 = vmul.f32 1.0, %v87
  %v89 = vrcp.pop %v78
  %v90 = vmul.f32 1.0, %v89
  %v91 = vrcp.pop %v79
  %v92 = vmul.f32 1.0, %v91
  %v93 = vrcp.pop %v80
  %v94 = vmul.f32 1.0, %v93
  %v95 = vrcp.pop %v81
  %v96 = vmul.f32 1.0, %v95
  %v97 = vrcp.pop %v82
  %v98 = vmul.f32 1.0, %v97
  %v99 = vsel %vm67, %v84, 0.0
  %v100 = vsel %vm68, %v86, 0.0
  %v101 = vsel %vm69, %v88, 0.0
  %v102 = vsel %vm70, %v90, 0.0
  %v103 = vsel %vm71, %v92, 0.0
  %v104 = vsel %vm72, %v94, 0.0
  %v105 = vsel %vm73, %v96, 0.0
  %v106 = vsel %vm74, %v98, 0.0
  %v107 = vld [vmem:[%s2] sm:$0xff]
  %v108 = vld [vmem:[%s2 + $0x8] sm:$0xff]
  %v117 = vunpack.c.l.b16 %v18
  %v118 = vunpack.c.l.b16 %v19
  %v119 = vunpack.c.l.b16 %v20
  %v120 = vunpack.c.l.b16 %v21
  %v121 = vunpack.c.l.b16 %v22
  %v122 = vunpack.c.l.b16 %v23
  %v123 = vunpack.c.l.b16 %v24
  %v124 = vunpack.c.l.b16 %v25
  %v125 = vpack.c.b16 %v118, %v117
  %v126 = vpack.c.b16 %v120, %v119
  %v127 = vpack.c.b16 %v122, %v121
  %v128 = vpack.c.b16 %v124, %v123
  %v131 = vunpack.c.l.b16 %v107
  %v132 = vunpack.c.h.b16 %v107
  %v133 = vunpack.c.l.b16 %v108
  %v134 = vunpack.c.h.b16 %v108
  %v135 = vpack.c.b16 %v133, %v131
  %v136 = vpack.c.b16 %v134, %v132
  %vm139 = vcmask 130048
  %v141 = vsel %vm139, %v125, 0
  %v144 = vsel %vm139, %v126, 0
  %v147 = vsel %vm139, %v127, 0
  %v150 = vsel %vm139, %v128, 0
  %152 = vmatprep.subr.bf16.mxu0 0
  %153 = vmatpush1.bf16.msra.mxu0 0
  %154 = vmatprep.subr.bf16.mxu0 0
  %155 = vmatpush1.bf16.msra.mxu0 0
  %156 = vmatprep.subr.bf16.mxu0 0
  %157 = vmatpush1.bf16.msra.mxu0 0
  %158 = vmatprep.subr.bf16.mxu0 0
  %159 = vmatpush1.bf16.msra.mxu0 0
  %160 = vmatprep.subr.bf16.mxu0 0
  %161 = vmatpush1.bf16.msra.mxu0 0
  %162 = vmatprep.subr.bf16.mxu0 0
  %163 = vmatpush1.bf16.msra.mxu0 0
  %164 = vmatprep.subr.bf16.mxu0 0
  %165 = vmatpush1.bf16.msra.mxu0 0
  %166 = vmatprep.subr.bf16.mxu0 %v136
  %167 = vmatpush1.bf16.msra.mxu0 %v135
  %168 = vmatprep.subr.bf16.mxu0 0
  %169 = vmatpush2.bf16.msra.mxu0 0
  %170 = vmatprep.subr.bf16.mxu0 0
  %171 = vmatpush2.bf16.msra.mxu0 0
  %172 = vmatprep.subr.bf16.mxu0 0
  %173 = vmatpush2.bf16.msra.mxu0 0
  %174 = vmatprep.subr.bf16.mxu0 0
  %175 = vmatpush2.bf16.msra.mxu0 0
  %176 = vmatprep.subr.bf16.mxu0 0
  %177 = vmatpush2.bf16.msra.mxu0 0
  %178 = vmatprep.subr.bf16.mxu0 0
  %179 = vmatpush2.bf16.msra.mxu0 0
  %180 = vmatprep.subr.bf16.mxu0 0
  %181 = vmatpush2.bf16.msra.mxu0 0
  %182 = vmatprep.subr.bf16.mxu0 0
  %183 = vmatpush2.bf16.msra.mxu0 0
  %184 = vmatprep.mubr.bf16.mxu0 0
  %185 = vmatmul.mubr.bf16.gmra.mxu0 %v141
  %v186 = vpop.f32.mrf.mxu0
  %v187 = vadd.f32 0.0, %v186
  %v188 = vpop.f32.mrf.mxu0
  %v189 = vadd.f32 0.0, %v188
  %v190 = vpop.f32.mrf.mxu0
  %v191 = vadd.f32 0.0, %v190
  %v192 = vpop.f32.mrf.mxu0
  %v193 = vadd.f32 0.0, %v192
  %194 = vmatprep.mubr.bf16.mxu0 0
  %195 = vmatmul.mubr.bf16.gmra.mxu0 %v144
  %v196 = vpop.f32.mrf.mxu0
  %v197 = vadd.f32 0.0, %v196
  %v198 = vpop.f32.mrf.mxu0
  %v199 = vadd.f32 0.0, %v198
  %v200 = vpop.f32.mrf.mxu0
  %v201 = vadd.f32 0.0, %v200
  %v202 = vpop.f32.mrf.mxu0
  %v203 = vadd.f32 0.0, %v202
  %204 = vmatprep.mubr.bf16.mxu0 0
  %205 = vmatmul.mubr.bf16.gmra.mxu0 %v147
  %v206 = vpop.f32.mrf.mxu0
  %v207 = vadd.f32 0.0, %v206
  %v208 = vpop.f32.mrf.mxu0
  %v209 = vadd.f32 0.0, %v208
  %v210 = vpop.f32.mrf.mxu0
  %v211 = vadd.f32 0.0, %v210
  %v212 = vpop.f32.mrf.mxu0
  %v213 = vadd.f32 0.0, %v212
  %214 = vmatprep.mubr.bf16.mxu0 0
  %215 = vmatmul.mubr.bf16.gmra.mxu0 %v150
  %v216 = vpop.f32.mrf.mxu0
  %v217 = vadd.f32 0.0, %v216
  %v218 = vpop.f32.mrf.mxu0
  %v219 = vadd.f32 0.0, %v218
  %v220 = vpop.f32.mrf.mxu0
  %v221 = vadd.f32 0.0, %v220
  %v222 = vpop.f32.mrf.mxu0
  %v223 = vadd.f32 0.0, %v222
  %224 = vdwg.mxu0
  %v225 = vmul.f32 %v187, %v189
  %v226 = vmul.f32 %v191, %v193
  %v227 = vmul.f32 %v197, %v199
  %v228 = vmul.f32 %v201, %v203
  %v229 = vmul.f32 %v207, %v209
  %v230 = vmul.f32 %v211, %v213
  %v231 = vmul.f32 %v217, %v219
  %v232 = vmul.f32 %v221, %v223
  %v233 = vpack.c.bf16 %v226, %v225
  %v234 = vpack.c.bf16 %v228, %v227
  %v235 = vpack.c.bf16 %v230, %v229
  %v236 = vpack.c.bf16 %v232, %v231
  %v237 = vld [vmem:[%s2 + $0x10] sm:$0xf]
  %v238 = vld [vmem:[%s2 + $0x18] sm:$0xf]
  %v239 = vld [vmem:[%s2 + $0x20] sm:$0xf]
  %v240 = vld [vmem:[%s2 + $0x28] sm:$0xf]
  %v241 = vld [vmem:[%s2 + $0x30] sm:$0xf]
  %v242 = vld [vmem:[%s2 + $0x38] sm:$0xf]
  %v243 = vld [vmem:[%s2 + $0x40] sm:$0xf]
  %v244 = vld [vmem:[%s2 + $0x48] sm:$0xf]
  %v245 = vld [vmem:[%s2 + $0x50] sm:$0xf]
  %v246 = vld [vmem:[%s2 + $0x58] sm:$0xf]
  %v247 = vld [vmem:[%s2 + $0x60] sm:$0xf]
  %v248 = vld [vmem:[%s2 + $0x68] sm:$0xf]
  %v249 = vld [vmem:[%s2 + $0x70] sm:$0xf]
  %v250 = vld [vmem:[%s2 + $0x78] sm:$0xf]
  %v251 = vld [vmem:[%s2 + $0x80] sm:$0xf]
  %v252 = vld [vmem:[%s2 + $0x88] sm:$0xf]
  %v269 = vunpack.c.l.b16 %v237
  %v270 = vunpack.c.l.b16 %v238
  %v271 = vunpack.c.l.b16 %v239
  %v272 = vunpack.c.l.b16 %v240
  %v273 = vunpack.c.l.b16 %v241
  %v274 = vunpack.c.l.b16 %v242
  %v275 = vunpack.c.l.b16 %v243
  %v276 = vunpack.c.l.b16 %v244
  %v277 = vunpack.c.l.b16 %v245
  %v278 = vunpack.c.l.b16 %v246
  %v279 = vunpack.c.l.b16 %v247
  %v280 = vunpack.c.l.b16 %v248
  %v281 = vunpack.c.l.b16 %v249
  %v282 = vunpack.c.l.b16 %v250
  %v283 = vunpack.c.l.b16 %v251
  %v284 = vunpack.c.l.b16 %v252
  %v285 = vpack.c.b16 %v270, %v269
  %v286 = vpack.c.b16 %v272, %v271
  %v287 = vpack.c.b16 %v274, %v273
  %v288 = vpack.c.b16 %v276, %v275
  %v289 = vpack.c.b16 %v278, %v277
  %v290 = vpack.c.b16 %v280, %v279
  %v291 = vpack.c.b16 %v282, %v281
  %v292 = vpack.c.b16 %v284, %v283
  %301 = vmatprep.subr.bf16.mxu0 0
  %302 = vmatpush1.bf16.msra.mxu0 %v292
  %303 = vmatprep.subr.bf16.mxu0 0
  %304 = vmatpush1.bf16.msra.mxu0 %v291
  %305 = vmatprep.subr.bf16.mxu0 0
  %306 = vmatpush1.bf16.msra.mxu0 %v290
  %307 = vmatprep.subr.bf16.mxu0 0
  %308 = vmatpush1.bf16.msra.mxu0 %v289
  %309 = vmatprep.subr.bf16.mxu0 0
  %310 = vmatpush1.bf16.msra.mxu0 %v288
  %311 = vmatprep.subr.bf16.mxu0 0
  %312 = vmatpush1.bf16.msra.mxu0 %v287
  %313 = vmatprep.subr.bf16.mxu0 0
  %314 = vmatpush1.bf16.msra.mxu0 %v286
  %315 = vmatprep.subr.bf16.mxu0 0
  %316 = vmatpush1.bf16.msra.mxu0 %v285
  %317 = vmatprep.subr.bf16.mxu0 0
  %318 = vmatpush2.bf16.msra.mxu0 0
  %319 = vmatprep.subr.bf16.mxu0 0
  %320 = vmatpush2.bf16.msra.mxu0 0
  %321 = vmatprep.subr.bf16.mxu0 0
  %322 = vmatpush2.bf16.msra.mxu0 0
  %323 = vmatprep.subr.bf16.mxu0 0
  %324 = vmatpush2.bf16.msra.mxu0 0
  %325 = vmatprep.subr.bf16.mxu0 0
  %326 = vmatpush2.bf16.msra.mxu0 0
  %327 = vmatprep.subr.bf16.mxu0 0
  %328 = vmatpush2.bf16.msra.mxu0 0
  %329 = vmatprep.subr.bf16.mxu0 0
  %330 = vmatpush2.bf16.msra.mxu0 0
  %331 = vmatprep.subr.bf16.mxu0 0
  %332 = vmatpush2.bf16.msra.mxu0 0
  %333 = vmatprep.mubr.bf16.mxu0 0
  %334 = vmatmul.mubr.bf16.gmra.mxu0 %v233
  %v335 = vpop.f32.mrf.mxu0
  %v336 = vadd.f32 0.0, %v335
  %v337 = vpop.f32.mrf.mxu0
  %v338 = vpop.f32.mrf.mxu0
  %v339 = vadd.f32 0.0, %v338
  %v340 = vpop.f32.mrf.mxu0
  %341 = vmatprep.mubr.bf16.mxu0 0
  %342 = vmatmul.mubr.bf16.gmra.mxu0 %v234
  %v343 = vpop.f32.mrf.mxu0
  %v344 = vadd.f32 0.0, %v343
  %v345 = vpop.f32.mrf.mxu0
  %v346 = vpop.f32.mrf.mxu0
  %v347 = vadd.f32 0.0, %v346
  %v348 = vpop.f32.mrf.mxu0
  %349 = vmatprep.mubr.bf16.mxu0 0
  %350 = vmatmul.mubr.bf16.gmra.mxu0 %v235
  %v351 = vpop.f32.mrf.mxu0
  %v352 = vadd.f32 0.0, %v351
  %v353 = vpop.f32.mrf.mxu0
  %v354 = vpop.f32.mrf.mxu0
  %v355 = vadd.f32 0.0, %v354
  %v356 = vpop.f32.mrf.mxu0
  %357 = vmatprep.mubr.bf16.mxu0 0
  %358 = vmatmul.mubr.bf16.gmra.mxu0 %v236
  %v359 = vpop.f32.mrf.mxu0
  %v360 = vadd.f32 0.0, %v359
  %v361 = vpop.f32.mrf.mxu0
  %v362 = vpop.f32.mrf.mxu0
  %v363 = vadd.f32 0.0, %v362
  %v364 = vpop.f32.mrf.mxu0
  %365 = vdwg.mxu0
  %374 = vrot.lane.b32.xlu0 %v336, 112
  %v375 = vpop.permute.xlu0 %374
  %376 = vrot.lane.b32.xlu0 %v339, 112
  %v377 = vpop.permute.xlu0 %376
  %378 = vrot.lane.b32.xlu0 %v344, 112
  %v379 = vpop.permute.xlu0 %378
  %380 = vrot.lane.b32.xlu0 %v347, 112
  %v381 = vpop.permute.xlu0 %380
  %382 = vrot.lane.b32.xlu0 %v352, 112
  %v383 = vpop.permute.xlu0 %382
  %384 = vrot.lane.b32.xlu0 %v355, 112
  %v385 = vpop.permute.xlu0 %384
  %386 = vrot.lane.b32.xlu0 %v360, 112
  %v387 = vpop.permute.xlu0 %386
  %388 = vrot.lane.b32.xlu0 %v363, 112
  %v389 = vpop.permute.xlu0 %388
  %v398 = vmul.f32 %v189, %v375
  %v399 = vmul.f32 %v193, %v377
  %v400 = vmul.f32 %v199, %v379
  %v401 = vmul.f32 %v203, %v381
  %v402 = vmul.f32 %v209, %v383
  %v403 = vmul.f32 %v213, %v385
  %v404 = vmul.f32 %v219, %v387
  %v405 = vmul.f32 %v223, %v389
  %v406 = vpack.c.bf16 %v399, %v398
  %v407 = vpack.c.bf16 %v401, %v400
  %v408 = vpack.c.bf16 %v403, %v402
  %v409 = vpack.c.bf16 %v405, %v404
  %v418 = vunpack.c.l.b16 %v26
  %v419 = vunpack.c.l.b16 %v27
  %v420 = vunpack.c.l.b16 %v28
  %v421 = vunpack.c.l.b16 %v29
  %v422 = vunpack.c.l.b16 %v30
  %v423 = vunpack.c.l.b16 %v31
  %v424 = vunpack.c.l.b16 %v32
  %v425 = vunpack.c.l.b16 %v33
  %v426 = vpack.c.b16 %v419, %v418
  %v427 = vpack.c.b16 %v421, %v420
  %v428 = vpack.c.b16 %v423, %v422
  %v429 = vpack.c.b16 %v425, %v424
  %v431 = vsel %vm42, %v426, 0
  %v434 = vsel %vm42, %v427, 0
  %v437 = vsel %vm42, %v428, 0
  %v440 = vsel %vm42, %v429, 0
  %442 = vmatprep.subr.bf16.mxu0 0
  %443 = vmatpush1.bf16.msra.mxu0 0
  %444 = vmatprep.subr.bf16.mxu0 0
  %445 = vmatpush1.bf16.msra.mxu0 0
  %446 = vmatprep.subr.bf16.mxu0 0
  %447 = vmatpush1.bf16.msra.mxu0 0
  %448 = vmatprep.subr.bf16.mxu0 0
  %449 = vmatpush1.bf16.msra.mxu0 0
  %450 = vmatprep.subr.bf16.mxu0 0
  %451 = vmatpush1.bf16.msra.mxu0 %v409
  %452 = vmatprep.subr.bf16.mxu0 0
  %453 = vmatpush1.bf16.msra.mxu0 %v408
  %454 = vmatprep.subr.bf16.mxu0 0
  %455 = vmatpush1.bf16.msra.mxu0 %v407
  %456 = vmatprep.subr.bf16.mxu0 0
  %457 = vmatpush1.bf16.msra.mxu0 %v406
  %458 = vmatprep.subr.bf16.mxu0 0
  %459 = vmatpush2.bf16.msra.mxu0 0
  %460 = vmatprep.subr.bf16.mxu0 0
  %461 = vmatpush2.bf16.msra.mxu0 0
  %462 = vmatprep.subr.bf16.mxu0 0
  %463 = vmatpush2.bf16.msra.mxu0 0
  %464 = vmatprep.subr.bf16.mxu0 0
  %465 = vmatpush2.bf16.msra.mxu0 0
  %466 = vmatprep.subr.bf16.mxu0 0
  %467 = vmatpush2.bf16.msra.mxu0 0
  %468 = vmatprep.subr.bf16.mxu0 0
  %469 = vmatpush2.bf16.msra.mxu0 0
  %470 = vmatprep.subr.bf16.mxu0 0
  %471 = vmatpush2.bf16.msra.mxu0 0
  %472 = vmatprep.subr.bf16.mxu0 0
  %473 = vmatpush2.bf16.msra.mxu0 0
  %474 = vmatprep.mubr.bf16.mxu0 0
  %475 = vmatmul.mubr.bf16.gmra.mxu0 %v431
  %v476 = vpop.f32.mrf.mxu0
  %v477 = vadd.f32 0.0, %v476
  %v478 = vpop.f32.mrf.mxu0
  %v479 = vpop.f32.mrf.mxu0
  %v480 = vadd.f32 0.0, %v479
  %v481 = vpop.f32.mrf.mxu0
  %482 = vmatprep.mubr.bf16.mxu0 0
  %483 = vmatmul.mubr.bf16.gmra.mxu0 %v434
  %v484 = vpop.f32.mrf.mxu0
  %v485 = vadd.f32 0.0, %v484
  %v486 = vpop.f32.mrf.mxu0
  %v487 = vpop.f32.mrf.mxu0
  %v488 = vadd.f32 0.0, %v487
  %v489 = vpop.f32.mrf.mxu0
  %490 = vmatprep.mubr.bf16.mxu0 0
  %491 = vmatmul.mubr.bf16.gmra.mxu0 %v437
  %v492 = vpop.f32.mrf.mxu0
  %v493 = vadd.f32 0.0, %v492
  %v494 = vpop.f32.mrf.mxu0
  %v495 = vpop.f32.mrf.mxu0
  %v496 = vadd.f32 0.0, %v495
  %v497 = vpop.f32.mrf.mxu0
  %498 = vmatprep.mubr.bf16.mxu0 0
  %499 = vmatmul.mubr.bf16.gmra.mxu0 %v440
  %v500 = vpop.f32.mrf.mxu0
  %v501 = vadd.f32 0.0, %v500
  %v502 = vpop.f32.mrf.mxu0
  %v503 = vpop.f32.mrf.mxu0
  %v504 = vadd.f32 0.0, %v503
  %v505 = vpop.f32.mrf.mxu0
  %506 = vdwg.mxu0
  %v507 = vmul.f32 %v477, %v99
  %v508 = vmul.f32 %v480, %v100
  %v509 = vmul.f32 %v485, %v101
  %v510 = vmul.f32 %v488, %v102
  %v511 = vmul.f32 %v493, %v103
  %v512 = vmul.f32 %v496, %v104
  %v513 = vmul.f32 %v501, %v105
  %v514 = vmul.f32 %v504, %v106
  %v515 = vld [vmem:[%s2 + $0x90] sm:$0xf]
  %v516 = vld [vmem:[%s2 + $0x98] sm:$0xf]
  %v517 = vld [vmem:[%s2 + $0xa0] sm:$0xf]
  %v518 = vld [vmem:[%s2 + $0xa8] sm:$0xf]
  %v519 = vld [vmem:[%s2 + $0xb0] sm:$0xf]
  %v520 = vld [vmem:[%s2 + $0xb8] sm:$0xf]
  %v521 = vpack.c.bf16 %v508, %v507
  %v522 = vpack.c.bf16 %v510, %v509
  %v523 = vpack.c.bf16 %v512, %v511
  %v524 = vpack.c.bf16 %v514, %v513
  %v531 = vunpack.c.l.b16 %v515
  %v532 = vunpack.c.l.b16 %v516
  %v533 = vunpack.c.l.b16 %v517
  %v534 = vunpack.c.l.b16 %v518
  %v535 = vunpack.c.l.b16 %v519
  %v536 = vunpack.c.l.b16 %v520
  %v537 = vpack.c.b16 %v532, %v531
  %v538 = vpack.c.b16 %v534, %v533
  %v539 = vpack.c.b16 %v536, %v535
  %vm543 = vcmask 392192
  %v545 = vsel %vm543, %v521, 0
  %v548 = vsel %vm543, %v522, 0
  %v551 = vsel %vm543, %v523, 0
  %v554 = vsel %vm543, %v524, 0
  %556 = vmatprep.subr.bf16.mxu0 0
  %557 = vmatpush1.bf16.msra.mxu0 0
  %558 = vmatprep.subr.bf16.mxu0 0
  %559 = vmatpush1.bf16.msra.mxu0 0
  %560 = vmatprep.subr.bf16.mxu0 0
  %561 = vmatpush1.bf16.msra.mxu0 0
  %562 = vmatprep.subr.bf16.mxu0 0
  %563 = vmatpush1.bf16.msra.mxu0 0
  %564 = vmatprep.subr.bf16.mxu0 0
  %565 = vmatpush1.bf16.msra.mxu0 0
  %566 = vmatprep.subr.bf16.mxu0 0
  %567 = vmatpush1.bf16.msra.mxu0 %v539
  %568 = vmatprep.subr.bf16.mxu0 0
  %569 = vmatpush1.bf16.msra.mxu0 %v538
  %570 = vmatprep.subr.bf16.mxu0 0
  %571 = vmatpush1.bf16.msra.mxu0 %v537
  %572 = vmatprep.subr.bf16.mxu0 0
  %573 = vmatpush2.bf16.msra.mxu0 0
  %574 = vmatprep.subr.bf16.mxu0 0
  %575 = vmatpush2.bf16.msra.mxu0 0
  %576 = vmatprep.subr.bf16.mxu0 0
  %577 = vmatpush2.bf16.msra.mxu0 0
  %578 = vmatprep.subr.bf16.mxu0 0
  %579 = vmatpush2.bf16.msra.mxu0 0
  %580 = vmatprep.subr.bf16.mxu0 0
  %581 = vmatpush2.bf16.msra.mxu0 0
  %582 = vmatprep.subr.bf16.mxu0 0
  %583 = vmatpush2.bf16.msra.mxu0 0
  %584 = vmatprep.subr.bf16.mxu0 0
  %585 = vmatpush2.bf16.msra.mxu0 0
  %586 = vmatprep.subr.bf16.mxu0 0
  %587 = vmatpush2.bf16.msra.mxu0 0
  %588 = vmatprep.mubr.bf16.mxu0 0
  %589 = vmatmul.mubr.bf16.gmra.mxu0 %v545
  %v590 = vpop.f32.mrf.mxu0
  %v591 = vadd.f32 0.0, %v590
  %v592 = vpop.f32.mrf.mxu0
  %v593 = vpop.f32.mrf.mxu0
  %v594 = vadd.f32 0.0, %v593
  %v595 = vpop.f32.mrf.mxu0
  %596 = vmatprep.mubr.bf16.mxu0 0
  %597 = vmatmul.mubr.bf16.gmra.mxu0 %v548
  %v598 = vpop.f32.mrf.mxu0
  %v599 = vadd.f32 0.0, %v598
  %v600 = vpop.f32.mrf.mxu0
  %v601 = vpop.f32.mrf.mxu0
  %v602 = vadd.f32 0.0, %v601
  %v603 = vpop.f32.mrf.mxu0
  %604 = vmatprep.mubr.bf16.mxu0 0
  %605 = vmatmul.mubr.bf16.gmra.mxu0 %v551
  %v606 = vpop.f32.mrf.mxu0
  %v607 = vadd.f32 0.0, %v606
  %v608 = vpop.f32.mrf.mxu0
  %v609 = vpop.f32.mrf.mxu0
  %v610 = vadd.f32 0.0, %v609
  %v611 = vpop.f32.mrf.mxu0
  %612 = vmatprep.mubr.bf16.mxu0 0
  %613 = vmatmul.mubr.bf16.gmra.mxu0 %v554
  %v614 = vpop.f32.mrf.mxu0
  %v615 = vadd.f32 0.0, %v614
  %v616 = vpop.f32.mrf.mxu0
  %v617 = vpop.f32.mrf.mxu0
  %v618 = vadd.f32 0.0, %v617
  %v619 = vpop.f32.mrf.mxu0
  %620 = vdwg.mxu0
  %v621 = vld [vmem:[%s3 + $0x8] sm:$0x1]
  %v622 = vlaneseq
  %v623 = vshrl.u32 %v622, 7
  %v624 = vsub.s32 0, %v623
  %v625 = vrot.slane %v621, %v624
  %v626 = vadd.f32 %v336, %v625
  %v627 = vadd.f32 %v339, %v625
  %v628 = vadd.f32 %v344, %v625
  %v629 = vadd.f32 %v347, %v625
  %v630 = vadd.f32 %v352, %v625
  %v631 = vadd.f32 %v355, %v625
  %v632 = vadd.f32 %v360, %v625
  %v633 = vadd.f32 %v363, %v625
  %v634 = vadd.f32 %v626, %v591
  %v635 = vadd.f32 %v627, %v594
  %v636 = vadd.f32 %v628, %v599
  %v637 = vadd.f32 %v629, %v602
  %v638 = vadd.f32 %v630, %v607
  %v639 = vadd.f32 %v631, %v610
  %v640 = vadd.f32 %v632, %v615
  %v641 = vadd.f32 %v633, %v618
  %v642 = vmax.f32 %v634, 0.0
  %v643 = vmax.f32 %v635, 0.0
  %v644 = vmax.f32 %v636, 0.0
  %v645 = vmax.f32 %v637, 0.0
  %v646 = vmax.f32 %v638, 0.0
  %v647 = vmax.f32 %v639, 0.0
  %v648 = vmax.f32 %v640, 0.0
  %v649 = vmax.f32 %v641, 0.0
  %v650 = vpack.c.bf16 %v643, %v642
  %v651 = vpack.c.bf16 %v645, %v644
  %v652 = vpack.c.bf16 %v647, %v646
  %v653 = vpack.c.bf16 %v649, %v648
  %654 = vmatprep.subr.bf16.mxu0 0
  %655 = vmatpush1.bf16.msra.mxu0 0
  %656 = vmatprep.subr.bf16.mxu0 0
  %657 = vmatpush1.bf16.msra.mxu0 0
  %658 = vmatprep.subr.bf16.mxu0 0
  %659 = vmatpush1.bf16.msra.mxu0 0
  %660 = vmatprep.subr.bf16.mxu0 0
  %661 = vmatpush1.bf16.msra.mxu0 0
  %662 = vmatprep.subr.bf16.mxu0 0
  %663 = vmatpush1.bf16.msra.mxu0 %v653
  %664 = vmatprep.subr.bf16.mxu0 0
  %665 = vmatpush1.bf16.msra.mxu0 %v652
  %666 = vmatprep.subr.bf16.mxu0 0
  %667 = vmatpush1.bf16.msra.mxu0 %v651
  %668 = vmatprep.subr.bf16.mxu0 0
  %669 = vmatpush1.bf16.msra.mxu0 %v650
  %670 = vmatprep.subr.bf16.mxu0 0
  %671 = vmatpush2.bf16.msra.mxu0 0
  %672 = vmatprep.subr.bf16.mxu0 0
  %673 = vmatpush2.bf16.msra.mxu0 0
  %674 = vmatprep.subr.bf16.mxu0 0
  %675 = vmatpush2.bf16.msra.mxu0 0
  %676 = vmatprep.subr.bf16.mxu0 0
  %677 = vmatpush2.bf16.msra.mxu0 0
  %678 = vmatprep.subr.bf16.mxu0 0
  %679 = vmatpush2.bf16.msra.mxu0 0
  %680 = vmatprep.subr.bf16.mxu0 0
  %681 = vmatpush2.bf16.msra.mxu0 0
  %682 = vmatprep.subr.bf16.mxu0 0
  %683 = vmatpush2.bf16.msra.mxu0 0
  %684 = vmatprep.subr.bf16.mxu0 0
  %685 = vmatpush2.bf16.msra.mxu0 0
  %686 = vmatprep.mubr.bf16.mxu0 0
  %687 = vmatmul.mubr.bf16.gmra.mxu0 %v431
  %v688 = vpop.f32.mrf.mxu0
  %v689 = vadd.f32 0.0, %v688
  %v690 = vpop.f32.mrf.mxu0
  %v691 = vpop.f32.mrf.mxu0
  %v692 = vadd.f32 0.0, %v691
  %v693 = vpop.f32.mrf.mxu0
  %694 = vmatprep.mubr.bf16.mxu0 0
  %695 = vmatmul.mubr.bf16.gmra.mxu0 %v434
  %v696 = vpop.f32.mrf.mxu0
  %v697 = vadd.f32 0.0, %v696
  %v698 = vpop.f32.mrf.mxu0
  %v699 = vpop.f32.mrf.mxu0
  %v700 = vadd.f32 0.0, %v699
  %v701 = vpop.f32.mrf.mxu0
  %702 = vmatprep.mubr.bf16.mxu0 0
  %703 = vmatmul.mubr.bf16.gmra.mxu0 %v437
  %v704 = vpop.f32.mrf.mxu0
  %v705 = vadd.f32 0.0, %v704
  %v706 = vpop.f32.mrf.mxu0
  %v707 = vpop.f32.mrf.mxu0
  %v708 = vadd.f32 0.0, %v707
  %v709 = vpop.f32.mrf.mxu0
  %710 = vmatprep.mubr.bf16.mxu0 0
  %711 = vmatmul.mubr.bf16.gmra.mxu0 %v440
  %v712 = vpop.f32.mrf.mxu0
  %v713 = vadd.f32 0.0, %v712
  %v714 = vpop.f32.mrf.mxu0
  %v715 = vpop.f32.mrf.mxu0
  %v716 = vadd.f32 0.0, %v715
  %v717 = vpop.f32.mrf.mxu0
  %718 = vdwg.mxu0
  %v719 = vmul.f32 %v689, %v99
  %v720 = vmul.f32 %v692, %v100
  %v721 = vmul.f32 %v697, %v101
  %v722 = vmul.f32 %v700, %v102
  %v723 = vmul.f32 %v705, %v103
  %v724 = vmul.f32 %v708, %v104
  %v725 = vmul.f32 %v713, %v105
  %v726 = vmul.f32 %v716, %v106
  %v727 = vld [vmem:[%s2 + $0xc0] sm:$0xf]
  %v728 = vld [vmem:[%s2 + $0xc8] sm:$0xf]
  %v729 = vld [vmem:[%s3 + $0x9] sm:$0x1]
  %v730 = vpack.c.bf16 %v720, %v719
  %v731 = vpack.c.bf16 %v722, %v721
  %v732 = vpack.c.bf16 %v724, %v723
  %v733 = vpack.c.bf16 %v726, %v725
  %v734 = vlaneseq
  %v735 = vshrl.u32 %v734, 7
  %v736 = vsub.s32 0, %v735
  %v737 = vrot.slane %v729, %v736
  %v740 = vunpack.c.l.b16 %v727
  %v741 = vunpack.c.l.b16 %v728
  %v742 = vpack.c.b16 %v741, %v740
  %v745 = vsel %vm139, %v730, 0
  %v748 = vsel %vm139, %v731, 0
  %v751 = vsel %vm139, %v732, 0
  %v754 = vsel %vm139, %v733, 0
  %756 = vmatprep.subr.bf16.mxu0 0
  %757 = vmatpush1.bf16.msra.mxu0 0
  %758 = vmatprep.subr.bf16.mxu0 0
  %759 = vmatpush1.bf16.msra.mxu0 0
  %760 = vmatprep.subr.bf16.mxu0 0
  %761 = vmatpush1.bf16.msra.mxu0 0
  %762 = vmatprep.subr.bf16.mxu0 0
  %763 = vmatpush1.bf16.msra.mxu0 0
  %764 = vmatprep.subr.bf16.mxu0 0
  %765 = vmatpush1.bf16.msra.mxu0 0
  %766 = vmatprep.subr.bf16.mxu0 0
  %767 = vmatpush1.bf16.msra.mxu0 0
  %768 = vmatprep.subr.bf16.mxu0 0
  %769 = vmatpush1.bf16.msra.mxu0 0
  %770 = vmatprep.subr.bf16.mxu0 0
  %771 = vmatpush1.bf16.msra.mxu0 %v742
  %772 = vmatprep.subr.bf16.mxu0 0
  %773 = vmatpush2.bf16.msra.mxu0 0
  %774 = vmatprep.subr.bf16.mxu0 0
  %775 = vmatpush2.bf16.msra.mxu0 0
  %776 = vmatprep.subr.bf16.mxu0 0
  %777 = vmatpush2.bf16.msra.mxu0 0
  %778 = vmatprep.subr.bf16.mxu0 0
  %779 = vmatpush2.bf16.msra.mxu0 0
  %780 = vmatprep.subr.bf16.mxu0 0
  %781 = vmatpush2.bf16.msra.mxu0 0
  %782 = vmatprep.subr.bf16.mxu0 0
  %783 = vmatpush2.bf16.msra.mxu0 0
  %784 = vmatprep.subr.bf16.mxu0 0
  %785 = vmatpush2.bf16.msra.mxu0 0
  %786 = vmatprep.subr.bf16.mxu0 0
  %787 = vmatpush2.bf16.msra.mxu0 0
  %788 = vmatprep.mubr.bf16.mxu0 0
  %789 = vmatmul.mubr.bf16.gmra.mxu0 %v745
  %v790 = vpop.f32.mrf.mxu0
  %v791 = vadd.f32 %v737, %v790
  %v792 = vpop.f32.mrf.mxu0
  %v793 = vpop.f32.mrf.mxu0
  %v794 = vadd.f32 %v737, %v793
  %v795 = vpop.f32.mrf.mxu0
  %796 = vmatprep.mubr.bf16.mxu0 0
  %797 = vmatmul.mubr.bf16.gmra.mxu0 %v748
  %v798 = vpop.f32.mrf.mxu0
  %v799 = vadd.f32 %v737, %v798
  %v800 = vpop.f32.mrf.mxu0
  %v801 = vpop.f32.mrf.mxu0
  %v802 = vadd.f32 %v737, %v801
  %v803 = vpop.f32.mrf.mxu0
  %804 = vmatprep.mubr.bf16.mxu0 0
  %805 = vmatmul.mubr.bf16.gmra.mxu0 %v751
  %v806 = vpop.f32.mrf.mxu0
  %v807 = vadd.f32 %v737, %v806
  %v808 = vpop.f32.mrf.mxu0
  %v809 = vpop.f32.mrf.mxu0
  %v810 = vadd.f32 %v737, %v809
  %v811 = vpop.f32.mrf.mxu0
  %812 = vmatprep.mubr.bf16.mxu0 0
  %813 = vmatmul.mubr.bf16.gmra.mxu0 %v754
  %v814 = vpop.f32.mrf.mxu0
  %v815 = vadd.f32 %v737, %v814
  %v816 = vpop.f32.mrf.mxu0
  %v817 = vpop.f32.mrf.mxu0
  %v818 = vadd.f32 %v737, %v817
  %v819 = vpop.f32.mrf.mxu0
  %820 = vdwg.mxu0
  %v821 = vmax.f32 %v791, 0.0
  %v822 = vmax.f32 %v794, 0.0
  %v823 = vmax.f32 %v799, 0.0
  %v824 = vmax.f32 %v802, 0.0
  %v825 = vmax.f32 %v807, 0.0
  %v826 = vmax.f32 %v810, 0.0
  %v827 = vmax.f32 %v815, 0.0
  %v828 = vmax.f32 %v818, 0.0
  %v829 = vld [vmem:[%s3] sm:$0xff]
  %v830 = vpack.c.bf16 %v829, %v829
  %v831 = vpack.c.bf16 %v822, %v821
  %v832 = vpack.c.bf16 %v824, %v823
  %v833 = vpack.c.bf16 %v826, %v825
  %v834 = vpack.c.bf16 %v828, %v827
  %v836 = vsel %vm42, %v830, 0
  %838 = vmatprep.subr.bf16.mxu0 0
  %839 = vmatpush1.bf16.msra.mxu0 0
  %840 = vmatprep.subr.bf16.mxu0 0
  %841 = vmatpush1.bf16.msra.mxu0 0
  %842 = vmatprep.subr.bf16.mxu0 0
  %843 = vmatpush1.bf16.msra.mxu0 0
  %844 = vmatprep.subr.bf16.mxu0 0
  %845 = vmatpush1.bf16.msra.mxu0 0
  %846 = vmatprep.subr.bf16.mxu0 0
  %847 = vmatpush1.bf16.msra.mxu0 %v834
  %848 = vmatprep.subr.bf16.mxu0 0
  %849 = vmatpush1.bf16.msra.mxu0 %v833
  %850 = vmatprep.subr.bf16.mxu0 0
  %851 = vmatpush1.bf16.msra.mxu0 %v832
  %852 = vmatprep.subr.bf16.mxu0 0
  %853 = vmatpush1.bf16.msra.mxu0 %v831
  %854 = vmatprep.subr.bf16.mxu0 0
  %855 = vmatpush2.bf16.msra.mxu0 0
  %856 = vmatprep.subr.bf16.mxu0 0
  %857 = vmatpush2.bf16.msra.mxu0 0
  %858 = vmatprep.subr.bf16.mxu0 0
  %859 = vmatpush2.bf16.msra.mxu0 0
  %860 = vmatprep.subr.bf16.mxu0 0
  %861 = vmatpush2.bf16.msra.mxu0 0
  %862 = vmatprep.subr.bf16.mxu0 0
  %863 = vmatpush2.bf16.msra.mxu0 0
  %864 = vmatprep.subr.bf16.mxu0 0
  %865 = vmatpush2.bf16.msra.mxu0 0
  %866 = vmatprep.subr.bf16.mxu0 0
  %867 = vmatpush2.bf16.msra.mxu0 0
  %868 = vmatprep.subr.bf16.mxu0 0
  %869 = vmatpush2.bf16.msra.mxu0 0
  %870 = vmatprep.mubr.bf16.mxu0 0
  %871 = vmatmul.mubr.bf16.gmra.mxu0 %v836
  %v872 = vpop.f32.mrf.mxu0
  %v873 = vadd.f32 0.0, %v872
  %v874 = vpop.f32.mrf.mxu0
  %v875 = vpop.f32.mrf.mxu0
  %v876 = vpop.f32.mrf.mxu0
  %877 = vdwg.mxu0
  %v878 = vld [vmem:[%s2 + $0xd0] sm:$0xf]
  %v879 = vld [vmem:[%s2 + $0xd8] sm:$0xf]
  %v880 = vld [vmem:[%s3 + $0xa] sm:$0x1]
  %v881 = vpack.c.bf16 %v873, %v873
  %v882 = vlaneseq
  %v883 = vshrl.u32 %v882, 7
  %v884 = vsub.s32 0, %v883
  %v885 = vrot.slane %v880, %v884
  %v888 = vunpack.c.l.b16 %v878
  %v889 = vunpack.c.l.b16 %v879
  %v890 = vpack.c.b16 %v889, %v888
  %v893 = vsel %vm139, %v881, 0
  %895 = vmatprep.subr.bf16.mxu0 0
  %896 = vmatpush1.bf16.msra.mxu0 0
  %897 = vmatprep.subr.bf16.mxu0 0
  %898 = vmatpush1.bf16.msra.mxu0 0
  %899 = vmatprep.subr.bf16.mxu0 0
  %900 = vmatpush1.bf16.msra.mxu0 0
  %901 = vmatprep.subr.bf16.mxu0 0
  %902 = vmatpush1.bf16.msra.mxu0 0
  %903 = vmatprep.subr.bf16.mxu0 0
  %904 = vmatpush1.bf16.msra.mxu0 0
  %905 = vmatprep.subr.bf16.mxu0 0
  %906 = vmatpush1.bf16.msra.mxu0 0
  %907 = vmatprep.subr.bf16.mxu0 0
  %908 = vmatpush1.bf16.msra.mxu0 0
  %909 = vmatprep.subr.bf16.mxu0 0
  %910 = vmatpush1.bf16.msra.mxu0 %v890
  %911 = vmatprep.subr.bf16.mxu0 0
  %912 = vmatpush2.bf16.msra.mxu0 0
  %913 = vmatprep.subr.bf16.mxu0 0
  %914 = vmatpush2.bf16.msra.mxu0 0
  %915 = vmatprep.subr.bf16.mxu0 0
  %916 = vmatpush2.bf16.msra.mxu0 0
  %917 = vmatprep.subr.bf16.mxu0 0
  %918 = vmatpush2.bf16.msra.mxu0 0
  %919 = vmatprep.subr.bf16.mxu0 0
  %920 = vmatpush2.bf16.msra.mxu0 0
  %921 = vmatprep.subr.bf16.mxu0 0
  %922 = vmatpush2.bf16.msra.mxu0 0
  %923 = vmatprep.subr.bf16.mxu0 0
  %924 = vmatpush2.bf16.msra.mxu0 0
  %925 = vmatprep.subr.bf16.mxu0 0
  %926 = vmatpush2.bf16.msra.mxu0 0
  %927 = vmatprep.mubr.bf16.mxu0 0
  %928 = vmatmul.mubr.bf16.gmra.mxu0 %v893
  %v929 = vpop.f32.mrf.mxu0
  %v930 = vadd.f32 %v885, %v929
  %v931 = vpop.f32.mrf.mxu0
  %v932 = vpop.f32.mrf.mxu0
  %v933 = vpop.f32.mrf.mxu0
  %934 = vdwg.mxu0
  %vm935 = vcmp.gt.f32.partialorder %v930, 0.0
  %v936 = vmul.f32 %v930, 0.01
  %v937 = vsel %vm935, %v930, %v936
  %v938 = vld [vmem:[%s3 + $0xb] sm:$0x1]
  %v939 = vld [vmem:[%s3 + $0xc] sm:$0x1]
  %v940 = vlaneseq
  %v941 = vshrl.u32 %v940, 7
  %v942 = vsub.s32 0, %v941
  %v943 = vrot.slane %v938, %v942
  %v944 = vmul.f32 %v937, %v943
  %vm945 = vcmask 261120
  %v946 = vsel %vm945, %v944, 0.0
  %947 = vadd.xlane.f32.xlu0 %v946
  %v948 = vpop.xlane.xlu0 %947
  %v949 = vlaneseq
  %v950 = vshrl.u32 %v949, 7
  %v951 = vsub.s32 0, %v950
  %v952 = vrot.slane %v939, %v951
  %v953 = vadd.f32 %v948, %v952
  %v954 = vsub.f32 0.0, %v953
  %v955 = vmul.f32 %v954, 1.442695
  %v956 = vpow.pop %v955
  %v957 = vadd.f32 %v956, 1.0
  %v958 = vrcp.pop %v957
  %v959 = vmul.f32 1.0, %v958
  %961 = vset.pattern.permute.xlu0 0
  %962 = vperm.xlu0 %961, %v959
  %v963 = vpop.permute.xlu0 %962
  %v965 = vsel %vm945, %v937, %v963
  %v966 = vsel %vm42, %v965, 0.0
  %967 = vst [vmem:[%s4] sm:$0xff] %v966
  // Predicated region
  $region18: #{hrgcn_forward.1} parent=0 // pred_check
    _
  $region19: #{hrgcn_forward.1} parent=0 // pred_check_branch
    %969 = sbr.rel (0) target = $region21
  $region20: #{hrgcn_forward.1} parent=0 // pred_region
    _
  $region21: #{hrgcn_forward.1} parent=0 // pred_fallthru
    _
  // Predicated region
  $region22: #{hrgcn_forward.1} parent=0 // pred_check
    _
  $region23: #{hrgcn_forward.1} parent=0 // pred_check_branch
    %971 = sbr.rel (0) target = $region25
  $region24: #{hrgcn_forward.1} parent=0 // pred_region
    _
  $region25: #{hrgcn_forward.1} parent=0 // pred_fallthru
    _

</llo_original>
